<compile_context>
chip_gen: v7x
topology: tpu7x:2x2x1
jax: 0.10.0
libtpu: 0.0.40
codegen_flags: <defaults>
</compile_context>

<pallas_src>
import functools
import math

import jax
import jax.numpy as jnp
from jax.experimental import pallas as pl
from jax.experimental.pallas import tpu as pltpu

_TARGET_BLOCK_ELEMS = 512 * 1024          # ~2 MiB of f32 per input block
_LANE_CHOICES = (1024, 512, 256, 128)     # lane-dense widths (multiples of 128)


def _prob_ce_kernel(yp_ref, yt_ref, out_ref, *, total_rows, block_rows):
    # Hot path: pure VPU multiply; the row-sum lowers to cross-vreg adds plus
    # one small XLU sublane reduce per block (not per element).
    prod = yp_ref[...].astype(jnp.float32) * yt_ref[...].astype(jnp.float32)
    lane = prod.shape[-1]

    if total_rows % block_rows:
        # Ragged last block: rows past `total_rows` contain unspecified
        # padding, so mask them out (static check -> only emitted when needed).
        base = pl.program_id(0) * block_rows
        row_id = base + jax.lax.broadcasted_iota(jnp.int32, prod.shape, 0)
        prod = jnp.where(row_id < total_rows, prod, 0.0)

    partial = jnp.sum(prod, axis=0, keepdims=True)            # (1, lane)
    # Write a lane-dense (8, lane) slab (partial in sublane 0, zeros elsewhere)
    # so the output block is always (8, 128k)-aligned and written exactly once
    # per grid step (keeps the grid axis truly parallel).
    row = jax.lax.broadcasted_iota(jnp.int32, (8, lane), 0)
    out_ref[...] = jnp.where(row == 0, partial, 0.0)


@functools.partial(jax.jit, static_argnames=("reduction",))
def prob_cross_entropy(y_pred, y_true, reduction="sum"):
    assert y_pred.shape == y_true.shape
    shape = y_pred.shape
    n_rows = math.prod(shape[:-1])   # number of distributions (last dim = prob axis)
    total = math.prod(shape)

    yp = y_pred.reshape(-1)
    yt = y_true.reshape(-1)

    # Lane-dense re-tiling: widest lane count that divides the element count
    # (free reshape, no copy). Only if nothing divides do we pad the flat tail.
    lane = next((c for c in _LANE_CHOICES if total % c == 0), None)
    padded_total = total
    if lane is None:
        lane = 128
        pad = (-total) % lane
        yp = jnp.pad(yp, (0, pad))   # padded zeros contribute 0 to the sum
        yt = jnp.pad(yt, (0, pad))
        padded_total = total + pad

    rows = padded_total // lane
    block_rows = min(_TARGET_BLOCK_ELEMS // lane, rows)
    num_blocks = pl.cdiv(rows, block_rows)

    yp2 = yp.reshape(rows, lane)
    yt2 = yt.reshape(rows, lane)

    itemsize = jnp.dtype(y_pred.dtype).itemsize
    cost = pl.CostEstimate(
        flops=2 * total,
        transcendentals=0,
        bytes_accessed=2 * padded_total * itemsize + num_blocks * 8 * lane * 4,
    )

    kernel = functools.partial(
        _prob_ce_kernel, total_rows=rows, block_rows=block_rows)

    partials = pl.pallas_call(
        kernel,
        out_shape=jax.ShapeDtypeStruct((num_blocks * 8, lane), jnp.float32),
        grid_spec=pltpu.PrefetchScalarGridSpec(
            num_scalar_prefetch=0,
            grid=(num_blocks,),
            in_specs=[
                pl.BlockSpec((block_rows, lane), lambda i: (i, 0)),
                pl.BlockSpec((block_rows, lane), lambda i: (i, 0)),
            ],
            out_specs=pl.BlockSpec((8, lane), lambda i: (i, 0)),
        ),
        compiler_params=pltpu.CompilerParams(
            dimension_semantics=("parallel",),   # per-block partials -> megacore OK
            vmem_limit_bytes=32 * 1024 * 1024,
        ),
        cost_estimate=cost,
    )(yp2, yt2)

    loss = -jnp.sum(partials)
    if reduction == "mean":
        # Matches torch's .sum(dim=-1).mean(): mean over the leading dims.
        loss = loss / jnp.float32(n_rows)
    return loss


def _reference(y_pred, y_true, reduction="sum"):
    s = -(y_true * y_pred).sum(axis=-1)
    return s.mean() if reduction == "mean" else s.sum()


if __name__ == "__main__":
    key = jax.random.PRNGKey(0)

    def make_inputs(k, shape):
        k1, k2 = jax.random.split(k)
        y_pred = jax.random.normal(k1, shape, dtype=jnp.float32)          # log-prob-like
        y_true = jax.nn.softmax(jax.random.normal(k2, shape), axis=-1)    # prob targets
        return y_pred, y_true

    shapes = [
        (2, 8, 32),     # primary small case: zero-copy lane-dense path, single block
        (3, 5, 48),     # element count not divisible by 128: flat-tail pad path
        (8, 64, 1030),  # multi-block grid with ragged (masked) last block
    ]

    k = key
    for shape in shapes:
        k, sub = jax.random.split(k)
        y_pred, y_true = make_inputs(sub, shape)
        for reduction in ("sum", "mean"):
            out = prob_cross_entropy(y_pred, y_true, reduction=reduction)
            jax.block_until_ready(out)
            ref = _reference(y_pred, y_true, reduction)
            assert jnp.allclose(out, ref, rtol=1e-4, atol=1e-3), (
                shape, reduction, out, ref)

    print("KERNEL_OK")
</pallas_src>

<mosaic_0001>
module attributes {stable_mosaic.version = 11 : i64} {
  func.func @_prob_ce_kernel(%arg0: i32, %arg1: memref<1x512xf32, #tpu.memory_space<vmem>>, %arg2: memref<1x512xf32, #tpu.memory_space<vmem>>, %arg3: memref<8x512xf32, #tpu.memory_space<vmem>>) attributes {dimension_semantics = [#tpu.dimension_semantics<parallel>], iteration_bounds = array<i64: 1>, scalar_prefetch = 0 : i64, scratch_operands = 0 : i64, tpu.core_type = #tpu.core_type<tc>, window_params = [{transform_indices = @transform_0, window_bounds = array<i64: 1, 512>}, {transform_indices = @transform_1, window_bounds = array<i64: 1, 512>}, {transform_indices = @transform_2, window_bounds = array<i64: 8, 512>}]} {
    %c0 = arith.constant 0 : index
    %c0_0 = arith.constant 0 : index
    %0 = vector.load %arg1[%c0, %c0_0] : memref<1x512xf32, #tpu.memory_space<vmem>>, vector<1x512xf32>
    %c0_1 = arith.constant 0 : index
    %c0_2 = arith.constant 0 : index
    %1 = vector.load %arg2[%c0_1, %c0_2] : memref<1x512xf32, #tpu.memory_space<vmem>>, vector<1x512xf32>
    %2 = arith.mulf %0, %1 : vector<1x512xf32>
    %cst = arith.constant dense<0.000000e+00> : vector<512xf32>
    %3 = vector.multi_reduction <add>, %2, %cst [0] : vector<1x512xf32> to vector<512xf32>
    %4 = vector.shape_cast %3 : vector<512xf32> to vector<1x512xf32>
    %5 = tpu.iota {dimensions = array<i32: 0>} : vector<8x512xi32>
    %c0_i32 = arith.constant 0 : i32
    %6 = vector.broadcast %c0_i32 : i32 to vector<8x512xi32>
    %7 = arith.cmpi eq, %5, %6 : vector<8x512xi32>
    %cst_3 = arith.constant 0.000000e+00 : f32
    %8 = vector.shape_cast %4 : vector<1x512xf32> to vector<1x512xf32>
    %9 = vector.broadcast %8 : vector<1x512xf32> to vector<8x512xf32>
    %10 = vector.broadcast %cst_3 : f32 to vector<8x512xf32>
    %11 = arith.select %7, %9, %10 : vector<8x512xi1>, vector<8x512xf32>
    %c0_4 = arith.constant 0 : index
    %c0_5 = arith.constant 0 : index
    %12 = vector.load %arg3[%c0_4, %c0_5] : memref<8x512xf32, #tpu.memory_space<vmem>>, vector<8x512xf32>
    tpu.vector_store %arg3[%c0_4, %c0_5], %11 {strides = array<i32>} : memref<8x512xf32, #tpu.memory_space<vmem>>, vector<8x512xf32>,
    return
  }
  func.func @transform_0(%arg0: i32) -> (i32, i32) {
    %c0_i32 = arith.constant 0 : i32
    %c0_i32_0 = arith.constant 0 : i32
    return %arg0, %c0_i32 : i32, i32
  }
  func.func @transform_1(%arg0: i32) -> (i32, i32) {
    %c0_i32 = arith.constant 0 : i32
    %c0_i32_0 = arith.constant 0 : i32
    return %arg0, %c0_i32 : i32, i32
  }
  func.func @transform_2(%arg0: i32) -> (i32, i32) {
    %c0_i32 = arith.constant 0 : i32
    %c0_i32_0 = arith.constant 0 : i32
    return %arg0, %c0_i32 : i32, i32
  }
}

</mosaic_0001>

<llo_original>
// kernel: prob_cross_entropy.1
$region0: #{prob_cross_entropy.1}
  #allocation0 [shape = 'u32[]', space=smem, size = 0x4, offset = 0x4, fixed_abs, tag = 'smem constant byte address 0x4 - core index']
  #allocation1 [shape = 'u32[144,128]{1,0:T(1,128)}', space=vmem, size = 0x12000, scoped, tag = 'internal scratch']
  %s0 = inlined_call_operand.vmem [shape: f32[1,512], index: 0, kind: input, shape index: {}]
  %s1 = inlined_call_operand.vmem [shape: f32[1,512], index: 1, kind: input, shape index: {}]
  %s2 = inlined_call_operand.vmem [shape: f32[8,512], index: 2, kind: output, shape index: {}]
  %s3 = sld [smem:[#allocation0]]
  $region18: #{prob_cross_entropy.1} parent=0
    _
  %s5 = ssub.s32 1, %s3
  %s6 = scalar_select 0, %s5, %s3
  // Predicated region
  $region2: #{prob_cross_entropy.1} parent=0 // pred_check
    _
  $region3: #{prob_cross_entropy.1} parent=0 // pred_check_branch
    %8 = sbr.rel (0) target = $region5
  $region4: #{prob_cross_entropy.1} parent=0 // pred_region
    _
  $region5: #{prob_cross_entropy.1} parent=0 // pred_fallthru
    _
  // Predicated region
  $region6: #{prob_cross_entropy.1} parent=0 // pred_check
    _
  $region7: #{prob_cross_entropy.1} parent=0 // pred_check_branch
    %10 = sbr.rel (0) target = $region9
  $region8: #{prob_cross_entropy.1} parent=0 // pred_region
    _
  $region9: #{prob_cross_entropy.1} parent=0 // pred_fallthru
    _
  %v11 = vld [vmem:[%s0] sm:$0xf]
  %v12 = vld [vmem:[%s1] sm:$0xf]
  %v13 = vmul.f32 %v11, %v12
  %v14 = vadd.f32 %v13, 0.0
  %v15 = vlaneseq
  %v16 = vshrl.u32 %v15, 7
  %vm17 = vcmp.eq.s32.totalorder %v16, 0
  %v19 = vlaneseq
  %v20 = vshrl.u32 %v19, 7
  %v21 = vsub.s32 0, %v20
  %v22 = vrot.slane %v14, %v21
  %v23 = vlaneseq
  %v24 = vshrl.u32 %v23, 7
  %v25 = vsub.s32 1, %v24
  %v26 = vrot.slane %v14, %v25
  %v27 = vlaneseq
  %v28 = vshrl.u32 %v27, 7
  %v29 = vsub.s32 2, %v28
  %v30 = vrot.slane %v14, %v29
  %v31 = vlaneseq
  %v32 = vshrl.u32 %v31, 7
  %v33 = vsub.s32 3, %v32
  %v34 = vrot.slane %v14, %v33
  %v39 = vsel %vm17, %v22, 0.0
  %v40 = vsel %vm17, %v26, 0.0
  %v41 = vsel %vm17, %v30, 0.0
  %v42 = vsel %vm17, %v34, 0.0
  %43 = vst [vmem:[%s2] sm:$0xff] %v39
  %44 = vst [vmem:[%s2 + $0x8] sm:$0xff] %v40
  %45 = vst [vmem:[%s2 + $0x10] sm:$0xff] %v41
  %46 = vst [vmem:[%s2 + $0x18] sm:$0xff] %v42
  // Predicated region
  $region10: #{prob_cross_entropy.1} parent=0 // pred_check
    _
  $region11: #{prob_cross_entropy.1} parent=0 // pred_check_branch
    %48 = sbr.rel (0) target = $region13
  $region12: #{prob_cross_entropy.1} parent=0 // pred_region
    _
  $region13: #{prob_cross_entropy.1} parent=0 // pred_fallthru
    _
  // Predicated region
  $region14: #{prob_cross_entropy.1} parent=0 // pred_check
    _
  $region15: #{prob_cross_entropy.1} parent=0 // pred_check_branch
    %50 = sbr.rel (0) target = $region17
  $region16: #{prob_cross_entropy.1} parent=0 // pred_region
    _
  $region17: #{prob_cross_entropy.1} parent=0 // pred_fallthru
    _

</llo_original>
